<compile_context>
chip_gen: v5e
topology: v5e:2x2
jax: 0.10.0
libtpu: 0.0.40
codegen_flags: <defaults>
</compile_context>

<pallas_src>
import math

import jax
import jax.numpy as jnp
from jax.experimental import pallas as pl
from jax.experimental.pallas import tpu as pltpu


def attention_kernel(x_ref, wqkv_ref, bqkv_ref, o_ref):
    # Per-grid-step view: one batch element, pure 2-D operands.
    S, F = x_ref.shape
    H3 = wqkv_ref.shape[-1]
    H = H3 // 3
    scale = 1.0 / math.sqrt(H)                     # trace-time constant

    # Fused QKV projection: one (S, F) x (F, 3H) MXU pass, f32 accumulation.
    qkv = jnp.dot(x_ref[...], wqkv_ref[...],
                  preferred_element_type=jnp.float32)
    qkv = qkv + bqkv_ref[...]                      # bias add stays f32

    q = qkv[:, 0 * H:1 * H] * scale                # fold 1/sqrt(H) into q
    k = qkv[:, 1 * H:2 * H]
    v = qkv[:, 2 * H:3 * H]

    # scores = q @ k^T via a contraction over H (no explicit XLU transpose).
    scores = jax.lax.dot_general(
        q, k,
        dimension_numbers=(((1,), (1,)), ((), ())),
        preferred_element_type=jnp.float32)        # (S, S)

    # Numerically-stable softmax over the last axis, f32 throughout.
    scores = scores - jnp.max(scores, axis=-1, keepdims=True)
    p = jnp.exp(scores)
    # Exact reciprocal (perf review): only S denominators, accuracy for free.
    inv_den = pl.reciprocal(jnp.sum(p, axis=-1, keepdims=True), approx=False)
    w = p * inv_den

    out = jnp.dot(w, v, preferred_element_type=jnp.float32)   # (S, H)
    o_ref[...] = out.astype(o_ref.dtype)


def prepare_attention_params(wq, bq, wk, bk, wv, bv,
                             operand_dtype=jnp.float32):
    """Fuse Q/K/V params ONCE, outside the per-call hot path.

    Weights are cast to `operand_dtype` (e.g. bf16 for native MXU throughput);
    the bias stays f32 since the bias add / softmax run in f32 in-kernel.
    """
    wqkv = jnp.concatenate([wq, wk, wv], axis=1).astype(operand_dtype)  # (F,3H)
    bqkv = jnp.concatenate([bq, bk, bv], axis=1).astype(jnp.float32)    # (1,3H)
    return wqkv, bqkv


def attention(x, wqkv, bqkv):
    B, S, F = x.shape
    H3 = wqkv.shape[1]
    H = H3 // 3

    flops = B * (2 * S * F * H3        # fused QKV projection
                 + 2 * S * S * H       # Q K^T
                 + 2 * S * S * H       # P V
                 + 5 * S * S)          # softmax elementwise
    transcendentals = B * (S * S + S)  # exp + reciprocal
    bytes_accessed = (x.size * x.dtype.itemsize
                      + wqkv.size * wqkv.dtype.itemsize
                      + bqkv.size * bqkv.dtype.itemsize
                      + B * S * H * 4)

    return pl.pallas_call(
        attention_kernel,
        out_shape=jax.ShapeDtypeStruct((B, S, H), jnp.float32),
        grid_spec=pltpu.PrefetchScalarGridSpec(
            num_scalar_prefetch=0,
            grid=(B,),                               # one batch element / step
            in_specs=[
                # Squeezed batch dim -> kernel sees clean 2-D tiles.
                pl.BlockSpec((None, S, F), lambda b: (b, 0, 0)),   # x
                pl.BlockSpec((F, H3), lambda b: (0, 0)),           # Wqkv
                pl.BlockSpec((1, H3), lambda b: (0, 0)),           # bqkv
            ],
            out_specs=pl.BlockSpec((None, S, H), lambda b: (b, 0, 0)),
        ),
        compiler_params=pltpu.CompilerParams(
            dimension_semantics=("parallel",)),      # v7x: 2 TCs over B
        cost_estimate=pl.CostEstimate(
            flops=flops,
            transcendentals=transcendentals,
            bytes_accessed=bytes_accessed),
    )(x, wqkv, bqkv)


def reference_attention(x, wq, bq, wk, bk, wv, bv):
    hp = jax.lax.Precision.HIGHEST
    q = jnp.dot(x, wq, precision=hp) + bq
    k = jnp.dot(x, wk, precision=hp) + bk
    v = jnp.dot(x, wv, precision=hp) + bv
    scores = jnp.einsum("bsh,bth->bst", q, k, precision=hp) / jnp.sqrt(
        jnp.float32(q.shape[-1]))
    w = jax.nn.softmax(scores, axis=-1)
    return jnp.einsum("bst,bth->bsh", w, v, precision=hp)


if __name__ == "__main__":
    B, S, IN_FEATURES, HIDDEN = 2, 8, 16, 32

    key = jax.random.PRNGKey(0)
    kx, kwq, kbq, kwk, kbk, kwv, kbv = jax.random.split(key, 7)

    # Deterministic param init (mimics nn.Linear's U(-1/sqrt(F), 1/sqrt(F))).
    bound = 1.0 / math.sqrt(IN_FEATURES)
    init = lambda k, shape: jax.random.uniform(
        k, shape, jnp.float32, minval=-bound, maxval=bound)

    x = jax.random.normal(kx, (B, S, IN_FEATURES), jnp.float32)
    wq = init(kwq, (IN_FEATURES, HIDDEN)); bq = init(kbq, (1, HIDDEN))
    wk = init(kwk, (IN_FEATURES, HIDDEN)); bk = init(kbk, (1, HIDDEN))
    wv = init(kwv, (IN_FEATURES, HIDDEN)); bv = init(kbv, (1, HIDDEN))

    ref = reference_attention(x, wq, bq, wk, bk, wv, bv)

    # --- f32 path: matches the PyTorch module's numerics ---------------------
    wqkv_f32, bqkv_f32 = prepare_attention_params(wq, bq, wk, bk, wv, bv,
                                                  jnp.float32)
    out = attention(x, wqkv_f32, bqkv_f32)
    out = jax.block_until_ready(out)
    assert out.shape == (B, S, HIDDEN)
    # Exact-reciprocal softmax -> tight tolerance restored.
    assert jnp.allclose(out, ref, atol=1e-4, rtol=1e-4)

    # --- bf16-operand path: half the DMA bytes, f32 accumulation -------------
    wqkv_bf16, bqkv_f = prepare_attention_params(wq, bq, wk, bk, wv, bv,
                                                 jnp.bfloat16)
    out_bf16 = attention(x.astype(jnp.bfloat16), wqkv_bf16, bqkv_f)
    out_bf16 = jax.block_until_ready(out_bf16)
    assert out_bf16.shape == (B, S, HIDDEN)
    assert jnp.allclose(out_bf16, ref, atol=5e-2, rtol=5e-2)

    print("KERNEL_OK")
</pallas_src>

<mosaic_0001>
module attributes {stable_mosaic.version = 11 : i64} {
  func.func @attention_kernel(%arg0: i32, %arg1: memref<1x8x16xf32, #tpu.memory_space<vmem>>, %arg2: memref<16x96xf32, #tpu.memory_space<vmem>>, %arg3: memref<1x96xf32, #tpu.memory_space<vmem>>, %arg4: memref<1x8x32xf32, #tpu.memory_space<vmem>>) attributes {dimension_semantics = [#tpu.dimension_semantics<parallel>], iteration_bounds = array<i64: 2>, scalar_prefetch = 0 : i64, scratch_operands = 0 : i64, tpu.core_type = #tpu.core_type<tc>, window_params = [{transform_indices = @transform_0, window_bounds = array<i64: 1, 8, 16>}, {pipeline_mode = #tpu.pipeline_mode<synchronous>, transform_indices = @transform_1, window_bounds = array<i64: 16, 96>}, {pipeline_mode = #tpu.pipeline_mode<synchronous>, transform_indices = @transform_2, window_bounds = array<i64: 1, 96>}, {transform_indices = @transform_3, window_bounds = array<i64: 1, 8, 32>}]} {
    %c0 = arith.constant 0 : index
    %c0_0 = arith.constant 0 : index
    %c0_1 = arith.constant 0 : index
    %0 = vector.load %arg1[%c0, %c0_0, %c0_1] : memref<1x8x16xf32, #tpu.memory_space<vmem>>, vector<1x8x16xf32>
    %1 = vector.shape_cast %0 : vector<1x8x16xf32> to vector<8x16xf32>
    %c0_2 = arith.constant 0 : index
    %c0_3 = arith.constant 0 : index
    %2 = vector.load %arg2[%c0_2, %c0_3] : memref<16x96xf32, #tpu.memory_space<vmem>>, vector<16x96xf32>
    %cst = arith.constant dense<0.000000e+00> : vector<8x96xf32>
    %3 = tpu.matmul %1, %2, %cst {dimension_numbers = #tpu.dot_dimension_numbers<[1], [0], [0], [1], [0, 0, 1, 1], [], []>} : vector<8x16xf32>, vector<16x96xf32>, vector<8x96xf32> -> vector<8x96xf32>
    %c0_4 = arith.constant 0 : index
    %c0_5 = arith.constant 0 : index
    %4 = vector.load %arg3[%c0_4, %c0_5] : memref<1x96xf32, #tpu.memory_space<vmem>>, vector<1x96xf32>
    %5 = vector.broadcast %4 : vector<1x96xf32> to vector<8x96xf32>
    %6 = arith.addf %3, %5 : vector<8x96xf32>
    %7 = vector.extract_strided_slice %6 {offsets = [0, 0], sizes = [8, 32], strides = [1, 1]} : vector<8x96xf32> to vector<8x32xf32>
    %cst_6 = arith.constant 0.176776692 : f32
    %8 = vector.broadcast %cst_6 : f32 to vector<8x32xf32>
    %9 = arith.mulf %7, %8 : vector<8x32xf32>
    %10 = vector.extract_strided_slice %6 {offsets = [0, 32], sizes = [8, 32], strides = [1, 1]} : vector<8x96xf32> to vector<8x32xf32>
    %11 = vector.extract_strided_slice %6 {offsets = [0, 64], sizes = [8, 32], strides = [1, 1]} : vector<8x96xf32> to vector<8x32xf32>
    %cst_7 = arith.constant dense<0.000000e+00> : vector<8x8xf32>
    %12 = tpu.matmul %9, %10, %cst_7 {dimension_numbers = #tpu.dot_dimension_numbers<[1], [1], [0], [0], [0, 0, 1, 0], [], []>} : vector<8x32xf32>, vector<8x32xf32>, vector<8x8xf32> -> vector<8x8xf32>
    %cst_8 = arith.constant dense<0xFF800000> : vector<8xf32>
    %13 = vector.multi_reduction <maximumf>, %12, %cst_8 [1] : vector<8x8xf32> to vector<8xf32>
    %14 = vector.shape_cast %13 : vector<8xf32> to vector<8x1xf32>
    %15 = vector.broadcast %14 : vector<8x1xf32> to vector<8x8xf32>
    %16 = arith.subf %12, %15 : vector<8x8xf32>
    %17 = math.exp %16 : vector<8x8xf32>
    %cst_9 = arith.constant dense<0.000000e+00> : vector<8xf32>
    %18 = vector.multi_reduction <add>, %17, %cst_9 [1] : vector<8x8xf32> to vector<8xf32>
    %19 = vector.shape_cast %18 : vector<8xf32> to vector<8x1xf32>
    %20 = tpu.reciprocal %19 : vector<8x1xf32> -> vector<8x1xf32>
    %21 = vector.broadcast %20 : vector<8x1xf32> to vector<8x8xf32>
    %22 = arith.mulf %17, %21 : vector<8x8xf32>
    %cst_10 = arith.constant dense<0.000000e+00> : vector<8x32xf32>
    %23 = tpu.matmul %22, %11, %cst_10 {dimension_numbers = #tpu.dot_dimension_numbers<[1], [0], [0], [1], [0, 0, 1, 1], [], []>} : vector<8x8xf32>, vector<8x32xf32>, vector<8x32xf32> -> vector<8x32xf32>
    %c0_11 = arith.constant 0 : index
    %c0_12 = arith.constant 0 : index
    %c0_13 = arith.constant 0 : index
    %24 = vector.load %arg4[%c0_11, %c0_12, %c0_13] : memref<1x8x32xf32, #tpu.memory_space<vmem>>, vector<1x8x32xf32>
    %25 = vector.shape_cast %24 : vector<1x8x32xf32> to vector<8x32xf32>
    %26 = vector.shape_cast %23 : vector<8x32xf32> to vector<1x8x32xf32>
    tpu.vector_store %arg4[%c0_11, %c0_12, %c0_13], %26 {strides = array<i32>} : memref<1x8x32xf32, #tpu.memory_space<vmem>>, vector<1x8x32xf32>,
    return
  }
  func.func @transform_0(%arg0: i32) -> (i32, i32, i32) {
    %c0_i32 = arith.constant 0 : i32
    %c0_i32_0 = arith.constant 0 : i32
    %c0_i32_1 = arith.constant 0 : i32
    return %arg0, %c0_i32, %c0_i32_0 : i32, i32, i32
  }
  func.func @transform_1(%arg0: i32) -> (i32, i32) {
    %c0_i32 = arith.constant 0 : i32
    %c0_i32_0 = arith.constant 0 : i32
    %c0_i32_1 = arith.constant 0 : i32
    return %c0_i32, %c0_i32_0 : i32, i32
  }
  func.func @transform_2(%arg0: i32) -> (i32, i32) {
    %c0_i32 = arith.constant 0 : i32
    %c0_i32_0 = arith.constant 0 : i32
    %c0_i32_1 = arith.constant 0 : i32
    return %c0_i32, %c0_i32_0 : i32, i32
  }
  func.func @transform_3(%arg0: i32) -> (i32, i32, i32) {
    %c0_i32 = arith.constant 0 : i32
    %c0_i32_0 = arith.constant 0 : i32
    %c0_i32_1 = arith.constant 0 : i32
    return %arg0, %c0_i32, %c0_i32_0 : i32, i32, i32
  }
}

</mosaic_0001>

<llo_original>
// kernel: tpu_custom_call.1
$region0: #{tpu_custom_call.1}
  #allocation0 [shape = 'u32[]', space=smem, size = 0x4, offset = 0x4, fixed_abs, tag = 'smem constant byte address 0x4 - core index']
  #allocation1 [shape = 'u32[72,128]{1,0:T(1,128)}', space=vmem, size = 0x9000, scoped, tag = 'internal scratch']
  %s0 = inlined_call_operand.hbm [shape: f32[2,8,16], index: 0, kind: input, shape index: {}]
  %s1 = inlined_call_operand.hbm [shape: f32[16,96], index: 1, kind: input, shape index: {}]
  %s2 = inlined_call_operand.vmem [shape: f32[1,96], index: 2, kind: input, shape index: {}]
  %s3 = inlined_call_operand.hbm [shape: f32[2,8,32], index: 3, kind: output, shape index: {}]
  %s4 = sld [smem:[#allocation0]]
  $region53: #{tpu_custom_call.1} parent=0
    _
  %s6 = ssub.s32 1, %s4
  %s7 = scalar_select 0, %s6, %s4
  $region1: #{tpu_custom_call.1} parent=0
    #allocation2 [shape = 'u8[8192]{0}', space=vmem, size = 0x2000, scoped, tag = 'input window, operand 0']
    #allocation3 [shape = 's32[2]{0}', space=sflag, size = 0x8, scoped, tag = 'scoped memory for tpu_custom_call.1']
    #allocation4 [shape = 's32[2]{0}', space=sflag, size = 0x8, scoped, tag = 'scoped memory for tpu_custom_call.1']
    #allocation5 [shape = 'u8[8192]{0}', space=vmem, size = 0x2000, scoped, tag = 'input window, operand 1, single buffered']
    #allocation6 [shape = 's32[1]{0}', space=sflag, size = 0x4, scoped, tag = 'scoped memory for tpu_custom_call.1']
    #allocation7 [shape = 'u8[8192]{0}', space=vmem, size = 0x2000, scoped, tag = 'output window, operand 0']
    %8 = vsyncpa [#allocation3], 0
    %s9 = scalar_lea.sflag [#allocation3], 1
    %10 = vsyncpa %s9, 0
    %11 = vsyncpa [#allocation6], 0
    %12 = vsyncpa [#allocation4], 0
    %s13 = scalar_lea.sflag [#allocation4], 1
    %14 = vsyncpa %s13, 0
    loop: start=0, step=1, limit=4
    $region2: #{tpu_custom_call.1} parent=1 // loop_pre_header
      _
    $region3: #{tpu_custom_call.1} parent=1 // loop_header
      %s16 = sphi 0, %s20
      %p17 = scmp.ge.s32.totalorder %s16, 4
      %s26 = sphi 0, %s28
      %s29 = sphi 0, %s26
      %s30 = sphi 0, %s29
      %s46 = sphi 0, %s30
      %s50 = sphi 0, %s50
      %s52 = sphi 0, %s50
      %s53 = sphi 0, %s52
      %s67 = sphi 0, %s53
      %s71 = sphi 0, %s71
      %s73 = sphi 0, %s71
      %s74 = sphi 0, %s73
      %s88 = sphi 0, %s74
      %s94 = sphi 0, %s96
      %s97 = sphi 0, %s94
      %s98 = sphi 0, %s97
      %s114 = sphi 0, %s98
    $region4: #{tpu_custom_call.1} parent=1 // loop_header_branch
      %19 = sbr.rel (%p17) target = $region8
    $region5: #{tpu_custom_call.1} parent=1 // loop_body
      %s21 = ssub.s32 %s16, 1
      %s22 = ssub.s32 %s16, 2
      %s23 = sadd.s32 %s16, 1
      %s24 = ssub.s32 %s16, %s23
      %p25 = scmp.eq.s32.totalorder %s24, 0
      %s27 = sadd.s32 %s26, 1
      %s28 = scalar_select %p25, %s26, %s27
      %p31 = pneg %p25
      %p32 = scmp.eq.s32.totalorder %s16, 1
      %p33 = por %p31, %p32
      %p34 = scmp.ne.s32.totalorder %s26, %s29
      %p35 = scmp.eq.s32.totalorder %s16, 0
      %p36 = por %p34, %p35
      %p37 = scmp.ne.s32.totalorder %s26, %s29
      %p38 = scmp.eq.s32.totalorder %s21, 1
      %p39 = por %p37, %p38
      %p40 = scmp.ne.s32.totalorder %s29, %s30
      %p41 = scmp.eq.s32.totalorder %s21, 0
      %p42 = por %p40, %p41
      %p43 = scmp.ne.s32.totalorder %s29, %s30
      %p44 = scmp.eq.s32.totalorder %s22, 1
      %p45 = por %p43, %p44
      %p47 = scmp.ne.s32.totalorder %s30, %s46
      %p48 = scmp.eq.s32.totalorder %s22, 0
      %p49 = por %p47, %p48
      %s51 = sadd.s32 %s50, 1
      %p54 = scmp.eq.s32.totalorder %s16, 1
      %p55 = scmp.ne.s32.totalorder %s50, %s52
      %p56 = scmp.eq.s32.totalorder %s16, 0
      %p57 = por %p55, %p56
      %p58 = scmp.ne.s32.totalorder %s50, %s52
      %p59 = scmp.eq.s32.totalorder %s21, 1
      %p60 = por %p58, %p59
      %p61 = scmp.ne.s32.totalorder %s52, %s53
      %p62 = scmp.eq.s32.totalorder %s21, 0
      %p63 = por %p61, %p62
      %p64 = scmp.ne.s32.totalorder %s52, %s53
      %p65 = scmp.eq.s32.totalorder %s22, 1
      %p66 = por %p64, %p65
      %p68 = scmp.ne.s32.totalorder %s53, %s67
      %p69 = scmp.eq.s32.totalorder %s22, 0
      %p70 = por %p68, %p69
      %s72 = sadd.s32 %s71, 1
      %p75 = scmp.eq.s32.totalorder %s16, 1
      %p76 = scmp.ne.s32.totalorder %s71, %s73
      %p77 = scmp.eq.s32.totalorder %s16, 0
      %p78 = por %p76, %p77
      %p79 = scmp.ne.s32.totalorder %s71, %s73
      %p80 = scmp.eq.s32.totalorder %s21, 1
      %p81 = por %p79, %p80
      %p82 = scmp.ne.s32.totalorder %s73, %s74
      %p83 = scmp.eq.s32.totalorder %s21, 0
      %p84 = por %p82, %p83
      %p85 = scmp.ne.s32.totalorder %s73, %s74
      %p86 = scmp.eq.s32.totalorder %s22, 1
      %p87 = por %p85, %p86
      %p89 = scmp.ne.s32.totalorder %s74, %s88
      %p90 = scmp.eq.s32.totalorder %s22, 0
      %p91 = por %p89, %p90
      %s92 = ssub.s32 %s16, %s23
      %p93 = scmp.eq.s32.totalorder %s92, 0
      %s95 = sadd.s32 %s94, 1
      %s96 = scalar_select %p93, %s94, %s95
      %p99 = pneg %p93
      %p100 = scmp.eq.s32.totalorder %s16, 1
      %p101 = por %p99, %p100
      %p102 = scmp.ne.s32.totalorder %s94, %s97
      %p103 = scmp.eq.s32.totalorder %s16, 0
      %p104 = por %p102, %p103
      %p105 = scmp.ne.s32.totalorder %s94, %s97
      %p106 = scmp.eq.s32.totalorder %s21, 1
      %p107 = por %p105, %p106
      %p108 = scmp.ne.s32.totalorder %s97, %s98
      %p109 = scmp.eq.s32.totalorder %s21, 0
      %p110 = por %p108, %p109
      %p111 = scmp.ne.s32.totalorder %s97, %s98
      %p112 = scmp.eq.s32.totalorder %s22, 1
      %p113 = por %p111, %p112
      %p115 = scmp.ne.s32.totalorder %s98, %s114
      %p116 = scmp.eq.s32.totalorder %s22, 0
      %p117 = por %p115, %p116
      %p118 = scmp.le.s32.totalorder 1, %s16
      %p119 = scmp.lt.s32.totalorder %s16, 3
      %p120 = pnand %p118, %p119
      %p121 = pneg %p120
      // Predicated region
      $region9: #{tpu_custom_call.1} parent=5 // pred_check
        _
      $region10: #{tpu_custom_call.1} parent=5 // pred_check_branch
        %123 = sbr.rel (%p120) target = $region12
      $region11: #{tpu_custom_call.1} parent=5 // pred_region
        %s124 = ssub.s32 %s16, 1
        // Predicated region
        $region13: #{tpu_custom_call.1} parent=11 // pred_check
          %p125 = pneg %p63
        $region14: #{tpu_custom_call.1} parent=11 // pred_check_branch
          %127 = sbr.rel (%p125) target = $region16
        $region15: #{tpu_custom_call.1} parent=11 // pred_region
          %129 = vsyncadd [#allocation6], 0
          %s130 = sshll.u32 %s1, 4
          %s131 = int_to_ptr.hbm [resolvable:$true] %s130
          %s132 = sshll.u32 [#allocation5], 4
          %s133 = int_to_ptr.vmem [resolvable:$true] %s132
          %138 = dma.hbm_to_vmem [thread:$0]  %s131, 256, %s133, [#allocation6], 128, 128, 8
        $region16: #{tpu_custom_call.1} parent=11 // pred_fallthru
          _
        // Predicated region
        $region17: #{tpu_custom_call.1} parent=11 // pred_check
          %p139 = pneg %p84
        $region18: #{tpu_custom_call.1} parent=11 // pred_check_branch
          %141 = sbr.rel (%p139) target = $region20
        $region19: #{tpu_custom_call.1} parent=11 // pred_region
          _
        $region20: #{tpu_custom_call.1} parent=11 // pred_fallthru
          _
      $region12: #{tpu_custom_call.1} parent=5 // pred_fallthru
        _
      %p142 = scmp.lt.s32.totalorder %s16, 2
      // Predicated region
      $region21: #{tpu_custom_call.1} parent=5 // pred_check
        %p143 = pneg %p142
      $region22: #{tpu_custom_call.1} parent=5 // pred_check_branch
        %145 = sbr.rel (%p143) target = $region24
      $region23: #{tpu_custom_call.1} parent=5 // pred_region
        // Predicated region
        $region25: #{tpu_custom_call.1} parent=23 // pred_check
          %p146 = pneg %p36
        $region26: #{tpu_custom_call.1} parent=23 // pred_check_branch
          %148 = sbr.rel (%p146) target = $region28
        $region27: #{tpu_custom_call.1} parent=23 // pred_region
          %s149 = sand.u32 %s26, 1
          %s150 = scalar_lea.sflag [#allocation3], %s149
          %s151 = sand.u32 %s26, 1
          %s152 = smul.addr %s151, 8
          %s153 = scalar_lea.vmem [#allocation2], %s152
          %155 = vsyncadd %s150, 0
          %s156 = smul.addr %s16, 8
          %s157 = scalar_lea.hbm %s0, %s156
          %s159 = sshll.u32 %s157, 4
          %s160 = int_to_ptr.hbm [resolvable:$true] %s159
          %s161 = sshll.u32 %s153, 4
          %s162 = int_to_ptr.vmem [resolvable:$true] %s161
          %164 = dma.hbm_to_vmem [thread:$0]  %s160, 128, %s162, %s150
        $region28: #{tpu_custom_call.1} parent=23 // pred_fallthru
          _
      $region24: #{tpu_custom_call.1} parent=5 // pred_fallthru
        _
      %p165 = scmp.le.s32.totalorder 1, %s16
      %p166 = scmp.lt.s32.totalorder %s16, 3
      %p167 = pnand %p165, %p166
      %p168 = pneg %p167
      // Predicated region
      $region29: #{tpu_custom_call.1} parent=5 // pred_check
        _
      $region30: #{tpu_custom_call.1} parent=5 // pred_check_branch
        %170 = sbr.rel (%p167) target = $region32
      $region31: #{tpu_custom_call.1} parent=5 // pred_region
        %s171 = ssub.s32 %s16, 1
        %s172 = sand.u32 %s29, 1
        %s173 = scalar_lea.sflag [#allocation3], %s172
        %s174 = sand.u32 %s29, 1
        %s175 = smul.addr %s174, 8
        %s176 = scalar_lea.vmem [#allocation2], %s175
        // Predicated region
        $region33: #{tpu_custom_call.1} parent=31 // pred_check
          %p177 = pneg %p42
        $region34: #{tpu_custom_call.1} parent=31 // pred_check_branch
          %179 = sbr.rel (%p177) target = $region36
        $region35: #{tpu_custom_call.1} parent=31 // pred_region
          %181 = dma.done %s173, 128
        $region36: #{tpu_custom_call.1} parent=31 // pred_fallthru
          _
        // Predicated region
        $region37: #{tpu_custom_call.1} parent=31 // pred_check
          %p182 = pneg %p63
        $region38: #{tpu_custom_call.1} parent=31 // pred_check_branch
          %184 = sbr.rel (%p182) target = $region40
        $region39: #{tpu_custom_call.1} parent=31 // pred_region
          %186 = dma.done [#allocation6], 256
        $region40: #{tpu_custom_call.1} parent=31 // pred_fallthru
          _
        %s187 = sand.u32 %s29, 1
        %s188 = scalar_lea.sflag [#allocation3], %s187
        %s189 = sand.u32 %s29, 1
        %s190 = smul.addr %s189, 8
        %s191 = scalar_lea.vmem [#allocation2], %s190
        %p192 = pneg %p42
        %p193 = pneg %p39
        %p194 = pneg %p63
        %p195 = pneg %p60
        %p196 = pneg %p84
        %p197 = pneg %p81
        %p198 = pneg %p110
        %p199 = pneg %p107
        %s200 = sand.u32 %s97, 1
        %s201 = scalar_lea.sflag [#allocation4], %s200
        %s202 = sand.u32 %s97, 1
        %s203 = smul.addr %s202, 8
        %s204 = scalar_lea.vmem [#allocation7], %s203
        %v205 = vld [vmem:[%s176] sm:$0xff]
        %v206 = vld [vmem:[#allocation5] sm:$0xff]
        %v207 = vld [vmem:[#allocation5 + $0x8] sm:$0xff]
        %v208 = vld [vmem:[%s2] sm:$0x1]
        %v210 = vperm.slane %v208, 0
        %vm212 = vcmask 130048
        %v214 = vsel %vm212, %v205, 0
        %216 = vmatpush.msra.mxu0 0.0
        %217 = vmatpush.msra.mxu0 0.0
        %218 = vmatpush.msra.mxu0 0.0
        %219 = vmatpush.msra.mxu0 0.0
        %220 = vmatpush.msra.mxu0 0.0
        %221 = vmatpush.msra.mxu0 0.0
        %222 = vmatpush.msra.mxu0 0.0
        %223 = vmatpush.msra.mxu0 0.0
        %224 = vmatpush.msra.mxu0 0.0
        %225 = vmatpush.msra.mxu0 0.0
        %226 = vmatpush.msra.mxu0 0.0
        %227 = vmatpush.msra.mxu0 0.0
        %228 = vmatpush.msra.mxu0 0.0
        %229 = vmatpush.msra.mxu0 0.0
        %230 = vmatpush.msra.mxu0 %v207
        %231 = vmatpush.msra.mxu0 %v206
        %232 = vmatmul.f32.gmra.mxu0 %v214
        %v233 = vpop.f32.mrf.mxu0
        %v234 = vadd.f32 %v210, %v233
        %235 = vdwg.mxu0
        %v236 = vmul.f32 %v234, 0.17677669
        %238 = vrot.lane.b32.xlu0 %v234, 96
        %v239 = vpop.permute.xlu0 %238
        %vm240 = vcmask 261120
        %v242 = vsel %vm240, %v236, 0
        %v244 = vsel %vm240, %v239, 0
        %246 = vmatpush.xpose.msra.mxu0 0.0
        %247 = vmatpush.xpose.msra.mxu0 0.0
        %248 = vmatpush.xpose.msra.mxu0 0.0
        %249 = vmatpush.xpose.msra.mxu0 0.0
        %250 = vmatpush.xpose.msra.mxu0 0.0
        %251 = vmatpush.xpose.msra.mxu0 0.0
        %252 = vmatpush.xpose.msra.mxu0 0.0
        %253 = vmatpush.xpose.msra.mxu0 0.0
        %254 = vmatpush.xpose.msra.mxu0 0.0
        %255 = vmatpush.xpose.msra.mxu0 0.0
        %256 = vmatpush.xpose.msra.mxu0 0.0
        %257 = vmatpush.xpose.msra.mxu0 0.0
        %258 = vmatpush.xpose.msra.mxu0 0.0
        %259 = vmatpush.xpose.msra.mxu0 0.0
        %260 = vmatpush.xpose.msra.mxu0 0.0
        %261 = vmatpush.xpose.msra.mxu0 %v244
        %262 = vmatmul.f32.gmra.mxu0 %v242
        %v263 = vpop.f32.mrf.mxu0
        %v264 = vadd.f32 0.0, %v263
        %265 = vdwg.mxu0
        %vm266 = vcmask 64512
        %v267 = vsel %vm266, %v264, -inf
        %268 = vmax.xlane.f32.xlu0 %v267
        %v269 = vpop.xlane.xlu0 %268
        %v270 = vsub.f32 %v264, %v269
        %v271 = vmul.f32 %v270, 1.442695
        %v272 = vpow.pop %v271
        %v273 = vsel %vm266, %v272, 0.0
        %274 = vadd.xlane.f32.xlu0 %v273
        %v275 = vpop.xlane.xlu0 %274
        %v276 = vrcp.pop %v275
        %v277 = vmul.f32 %v275, %v276
        %v278 = vsub.f32 1.0, %v277
        %v279 = vmul.f32 %v276, %v278
        %v280 = vadd.f32 %v276, %v279
        %vm281 = vweird.f32 %v275
        %vm282 = vweird.f32 %v276
        %vm283 = vmor %vm281, %vm282
        %v284 = vsel %vm283, %v276, %v280
        %v285 = vand.u32 2147483647, %v275
        %vm286 = vcmp.eq.f32.partialorder %v285, 8.507059e+37
        %v287 = vand.u32 %v275, 2147483648
        %v288 = vor.u32 1.1754944e-38, %v287
        %v289 = vsel %vm286, %v288, %v284
        %v290 = vmul.f32 %v272, %v289
        %291 = vrot.lane.b32.xlu0 %v234, 64
        %v292 = vpop.permute.xlu0 %291
        %v295 = vsel %vm266, %v290, 0
        %297 = vmatpush.msra.mxu0 0.0
        %298 = vmatpush.msra.mxu0 0.0
        %299 = vmatpush.msra.mxu0 0.0
        %300 = vmatpush.msra.mxu0 0.0
        %301 = vmatpush.msra.mxu0 0.0
        %302 = vmatpush.msra.mxu0 0.0
        %303 = vmatpush.msra.mxu0 0.0
        %304 = vmatpush.msra.mxu0 0.0
        %305 = vmatpush.msra.mxu0 0.0
        %306 = vmatpush.msra.mxu0 0.0
        %307 = vmatpush.msra.mxu0 0.0
        %308 = vmatpush.msra.mxu0 0.0
        %309 = vmatpush.msra.mxu0 0.0
        %310 = vmatpush.msra.mxu0 0.0
        %311 = vmatpush.msra.mxu0 0.0
        %312 = vmatpush.msra.mxu0 %v292
        %313 = vmatmul.f32.gmra.mxu0 %v295
        %v314 = vpop.f32.mrf.mxu0
        %v315 = vadd.f32 0.0, %v314
        %316 = vdwg.mxu0
        %317 = vst.msk [vmem:[%s204] sm:$0xff] %vm240, %v315
        %s318 = sand.u32 %s97, 1
        %s319 = scalar_lea.sflag [#allocation4], %s318
        %s320 = sand.u32 %s97, 1
        %s321 = smul.addr %s320, 8
        %s322 = scalar_lea.vmem [#allocation7], %s321
        // Predicated region
        $region41: #{tpu_custom_call.1} parent=31 // pred_check
          %p323 = pneg %p107
        $region42: #{tpu_custom_call.1} parent=31 // pred_check_branch
          %325 = sbr.rel (%p323) target = $region44
        $region43: #{tpu_custom_call.1} parent=31 // pred_region
          %327 = vsyncadd %s319, 0
          %s328 = smul.addr %s21, 8
          %s329 = scalar_lea.hbm %s3, %s328
          %s331 = sshll.u32 %s322, 4
          %s332 = int_to_ptr.vmem [resolvable:$true] %s331
          %s333 = sshll.u32 %s329, 4
          %s334 = int_to_ptr.hbm [resolvable:$true] %s333
          %336 = dma.vmem_to_hbm [thread:$0]  %s332, 128, %s334, %s319
        $region44: #{tpu_custom_call.1} parent=31 // pred_fallthru
          _
      $region32: #{tpu_custom_call.1} parent=5 // pred_fallthru
        _
      %p337 = scmp.le.s32.totalorder 2, %s16
      // Predicated region
      $region45: #{tpu_custom_call.1} parent=5 // pred_check
        %p338 = pneg %p337
      $region46: #{tpu_custom_call.1} parent=5 // pred_check_branch
        %340 = sbr.rel (%p338) target = $region48
      $region47: #{tpu_custom_call.1} parent=5 // pred_region
        %s341 = ssub.s32 %s16, 2
        // Predicated region
        $region49: #{tpu_custom_call.1} parent=47 // pred_check
          %p342 = pneg %p113
        $region50: #{tpu_custom_call.1} parent=47 // pred_check_branch
          %344 = sbr.rel (%p342) target = $region52
        $region51: #{tpu_custom_call.1} parent=47 // pred_region
          %s345 = sand.u32 %s98, 1
          %s346 = scalar_lea.sflag [#allocation4], %s345
          %s347 = sand.u32 %s98, 1
          %s348 = smul.addr %s347, 8
          %s349 = scalar_lea.vmem [#allocation7], %s348
          %351 = dma.done %s346, 128
        $region52: #{tpu_custom_call.1} parent=47 // pred_fallthru
          _
      $region48: #{tpu_custom_call.1} parent=5 // pred_fallthru
        _
    $region6: #{tpu_custom_call.1} parent=1 // loop_footer
      %s20 = sadd.s32 1, %s16
    $region7: #{tpu_custom_call.1} parent=1 // loop_footer_branch
      %15 = sbr.rel target = $region3
    $region8: #{tpu_custom_call.1} parent=1 // loop_exit
      _
    %352 = vsyncpa [#allocation3], 1
    %s353 = scalar_lea.sflag [#allocation3], 1
    %354 = vsyncpa %s353, 1
    %355 = vsyncpa [#allocation6], 1
    %356 = vsyncpa [#allocation4], 1
    %s357 = scalar_lea.sflag [#allocation4], 1
    %358 = vsyncpa %s357, 1

</llo_original>
